<compile_context>
chip_gen: v6e
topology: v6e:2x2x1
jax: 0.10.0
libtpu: 0.0.40
codegen_flags: <defaults>
</compile_context>

<pallas_src>
import functools

import numpy as np
import jax
import jax.numpy as jnp
from jax import lax
from jax.experimental import pallas as pl
from jax.experimental.pallas import tpu as pltpu

LARGE_NUMBER = 1.0e9


def _ntxent_tiled_kernel(zq_ref, zk_ref, nll_ref, acc_ref,
                         m_sc, l_sc, pos_sc, *, n, half, padded):
    """One (row-tile, col-tile) step of the NT-Xent forward.

    zq_ref:  (TQ, D) bf16 pre-normalized rows (resident across the col axis)
    zk_ref:  (TK, D) bf16 pre-normalized rows (streamed per col tile)
    nll_ref: (TQ, 1) per-row -logprob[i, label_i]   (written at last col tile)
    acc_ref: (TQ, 1) per-row top-1 accuracy         (written at last col tile)
    scratch: running softmax max / sum-exp, positive logit
    """
    qi = pl.program_id(0)
    ki = pl.program_id(1)
    nk = pl.num_programs(1)
    tq = zq_ref.shape[0]
    tk = zk_ref.shape[0]

    @pl.when(ki == 0)
    def _init():
        m_sc[...] = jnp.full_like(m_sc, -jnp.inf)
        l_sc[...] = jnp.zeros_like(l_sc)
        pos_sc[...] = jnp.zeros_like(pos_sc)

    row0 = qi * tq
    col0 = ki * tk

    # (TQ, TK) similarity tile on the MXU: bf16 operands (pre-normalized and already
    # scaled by 1/sqrt(tau)), f32 accumulator, contracting over D (no transpose).
    s = lax.dot_general(
        zq_ref[...], zk_ref[...],
        dimension_numbers=(((1,), (1,)), ((), ())),
        preferred_element_type=jnp.float32)

    if padded:
        # Awkward-batch path only: exclude padded columns from softmax / top-1.
        col_pad = col0 + lax.broadcasted_iota(jnp.int32, (tq, tk), 1)
        s = jnp.where(col_pad >= n, jnp.float32(-LARGE_NUMBER), s)

    # ---- positive logit: only in the column tile(s) that can hold label columns ----
    # label_i = (i + n/2) % n for multiplier == 2; for this row tile the label columns
    # form a (possibly wrapping) contiguous range of length <= min(tq, n).
    seg = min(tq, n)
    a0 = row0 + half
    a0 = jnp.where(a0 >= n, a0 - n, a0)
    a1 = a0 + seg
    pos_hit = jnp.logical_or(
        jnp.logical_and(a0 < col0 + tk, col0 < jnp.minimum(a1, n)),
        col0 < a1 - n)

    @pl.when(pos_hit)
    def _grab_positive():
        row_g = row0 + lax.broadcasted_iota(jnp.int32, (tq, tk), 0)
        col_g = col0 + lax.broadcasted_iota(jnp.int32, (tq, tk), 1)
        lab = row_g + half
        lab = jnp.where(lab >= n, lab - n, lab)
        # The label column is never the diagonal (half > 0), so raw s is safe here,
        # and it is bitwise the same value that feeds the running max below.
        pos_sc[...] += jnp.sum(jnp.where(col_g == lab, s, 0.0), axis=1, keepdims=True)

    # ---- online softmax statistics (flash-style running max / sum-exp) ----
    def _update(sm):
        tile_max = jnp.max(sm, axis=1, keepdims=True)
        m_new = jnp.maximum(m_sc[...], tile_max)
        alpha = jnp.exp(m_sc[...] - m_new)
        # TODO(synk): on v6e/v7x the exp could run in bf16 on the EUP (~2x
        # transcendental throughput, f32 row-sum kept); not done generically because
        # v5e has no bf16 EUP/VPU.
        l_sc[...] = alpha * l_sc[...] + jnp.sum(jnp.exp(sm - m_new), axis=1,
                                                keepdims=True)
        m_sc[...] = m_new

    # The diagonal mask is only non-trivial in the one column tile that overlaps this
    # row tile; gate the iota/compare/select so all other tiles skip it entirely.
    diag_hit = jnp.logical_and(col0 < row0 + tq, row0 < col0 + tk)

    @pl.when(diag_hit)
    def _with_diag_mask():
        row_g = row0 + lax.broadcasted_iota(jnp.int32, (tq, tk), 0)
        col_g = col0 + lax.broadcasted_iota(jnp.int32, (tq, tk), 1)
        _update(jnp.where(col_g == row_g, jnp.float32(-LARGE_NUMBER), s))

    @pl.when(jnp.logical_not(diag_hit))
    def _without_diag_mask():
        _update(s)

    @pl.when(ki == nk - 1)
    def _finalize():
        lse = m_sc[...] + jnp.log(l_sc[...])
        # -logprob[i, label_i]; the wrapper sums and scales by 1/(n*(m-1)*norm).
        nll_ref[...] = lse - pos_sc[...]
        # m_sc is the max of the diag-masked logits, so the label is top-1 iff its
        # logit attains it (pos <= m always; equality is bit-exact, see _grab_positive).
        acc_ref[...] = (pos_sc[...] >= m_sc[...]).astype(jnp.float32)


def _pick_tile(n, target, prefer_split=False):
    """Largest multiple-of-8 divisor of n that is <= target (n must be % 8 == 0)."""
    assert n % 8 == 0 and target >= 8
    best = 8
    for t in range(min(target, n), 7, -1):
        if n % t == 0 and t % 8 == 0:
            best = t
            break
    if prefer_split and best == n:
        # Prefer >= 2 row tiles (shards the "parallel" axis across v7x's two
        # TensorCores) as long as the tile stays large enough to sit near the
        # HBM roofline.
        for t in range(n // 2, 255, -1):
            if n % t == 0 and t % 8 == 0:
                return t
    return best


def ntxent_dfp_forward(z, z_clip, *, tau=1.0, multiplier=2, norm=1.0,
                       block_q=1024, block_k=512):
    """Returns (loss, acc) exactly like NTXent_dfp.forward (non-distributed)."""
    del z_clip  # dead code path in the reference module (see note at top)
    n, d = z.shape
    m = multiplier
    assert n % m == 0
    # TODO(synk): multiplier > 2 needs top-k set accuracy and the general label layout;
    # only the default multiplier == 2 path is implemented here.
    assert m == 2

    # Pad awkward batch sizes up to a tile-friendly multiple (padded cols masked
    # in-kernel, padded rows sliced off below).  Never falls back to an O(n) tile.
    pad_to = 8 if n <= 256 else 128
    n_pad = ((n + pad_to - 1) // pad_to) * pad_to

    tq = _pick_tile(n_pad, block_q, prefer_split=True)
    tk = _pick_tile(n_pad, block_k)
    grid = (n_pad // tq, n_pad // tk)

    # Pre-pass: F.normalize(z, p=2, dim=1) / sqrt(tau) in f32, cast to bf16 once.
    # The kernel then streams half the HBM bytes and does no per-step normalization
    # (eps matches torch's 1e-12 norm clamp).
    zf = z.astype(jnp.float32)
    if n_pad != n:
        zf = jnp.concatenate([zf, jnp.zeros((n_pad - n, d), jnp.float32)], axis=0)
    inv = lax.rsqrt(jnp.maximum(jnp.sum(zf * zf, axis=1, keepdims=True), 1e-24))
    zn = (zf * (inv * jnp.float32(1.0 / np.sqrt(tau)))).astype(jnp.bfloat16)

    kernel = functools.partial(_ntxent_tiled_kernel, n=n, half=n // 2,
                               padded=(n_pad != n))

    cost = pl.CostEstimate(
        flops=2 * n_pad * n_pad * d,
        transcendentals=n_pad * n_pad + 2 * n_pad,
        # zq row tiles are read once total; zk is re-streamed once per row tile.
        bytes_accessed=2 * n_pad * d * (1 + grid[0]) + 2 * 4 * n_pad,
    )

    # TODO(synk): sweep pipeline_mode=pl.Buffered(3) on the zk (column) BlockSpec once
    # profiles show exposed DMA latency; kept at the default double buffer here.
    nll, acc = pl.pallas_call(
        kernel,
        out_shape=(
            jax.ShapeDtypeStruct((n_pad, 1), jnp.float32),
            jax.ShapeDtypeStruct((n_pad, 1), jnp.float32),
        ),
        grid_spec=pltpu.PrefetchScalarGridSpec(
            num_scalar_prefetch=0,
            grid=grid,
            in_specs=[
                pl.BlockSpec((tq, d), lambda qi, ki: (qi, 0)),   # resident row tile
                pl.BlockSpec((tk, d), lambda qi, ki: (ki, 0)),   # streamed col tile
            ],
            out_specs=(
                pl.BlockSpec((tq, 1), lambda qi, ki: (qi, 0)),
                pl.BlockSpec((tq, 1), lambda qi, ki: (qi, 0)),
            ),
            scratch_shapes=[
                pltpu.VMEM((tq, 1), jnp.float32),   # running max (row max of logits)
                pltpu.VMEM((tq, 1), jnp.float32),   # running sum-exp
                pltpu.VMEM((tq, 1), jnp.float32),   # positive logit
            ],
        ),
        compiler_params=pltpu.CompilerParams(
            dimension_semantics=("parallel", "arbitrary"),
            # <= ~56 MiB so the same config also fits v7x's 64 MiB/TC VMEM.
            vmem_limit_bytes=48 * 1024 * 1024,
        ),
        cost_estimate=cost,
    )(zn, zn)

    loss = jnp.sum(nll[:n, 0]) / jnp.float32(n * (m - 1) * norm)
    return loss, acc[:n, 0]


def _reference_forward(z, *, tau=1.0, multiplier=2, norm=1.0):
    """Plain-JAX f32 reference mirroring the PyTorch math (validation only)."""
    n = z.shape[0]
    m = multiplier
    labels_np = (np.repeat(np.arange(n), m) + np.tile((np.arange(m) * n) // m, n)) % n
    labels = jnp.asarray(labels_np.reshape(n, m)[:, 1:].reshape(-1), dtype=jnp.int32)

    zn = z / jnp.maximum(jnp.linalg.norm(z, axis=1, keepdims=True), 1e-12)
    zn = zn / jnp.sqrt(tau)
    logits = zn @ zn.T
    logits = logits.at[jnp.arange(n), jnp.arange(n)].set(-LARGE_NUMBER)
    logprob = jax.nn.log_softmax(logits, axis=1)
    loss = -logprob[jnp.arange(n), labels].sum() / n / (m - 1) / norm
    pred = logprob.at[jnp.arange(n), jnp.arange(n)].set(-LARGE_NUMBER)
    acc = (jnp.argmax(pred, axis=1) == labels).astype(jnp.float32)
    top2 = lax.top_k(pred, 2)[0]
    margin = top2[:, 0] - top2[:, 1]      # top-1 vs top-2 gap (tie sensitivity)
    return loss, acc, margin


def _check_case(key, n, d, d_clip, **kw):
    k1, k2 = jax.random.split(key)
    z = jax.random.normal(k1, (n, d), dtype=jnp.float32)
    z_clip = jax.random.normal(k2, (n, d_clip), dtype=jnp.float32)

    loss, acc = ntxent_dfp_forward(z, z_clip, tau=1.0, multiplier=2, norm=1.0, **kw)
    loss = jax.block_until_ready(loss)
    acc = jax.block_until_ready(acc)

    ref_loss, ref_acc, margin = _reference_forward(z, tau=1.0, multiplier=2, norm=1.0)
    assert np.allclose(np.asarray(loss), np.asarray(ref_loss), atol=1e-2, rtol=1e-2), (
        loss, ref_loss)
    # bf16 MXU operands can only flip top-1 on near-ties; check rows with clear margin.
    stable = np.asarray(margin) > 1e-2
    assert np.array_equal(np.asarray(acc)[stable], np.asarray(ref_acc)[stable]), (
        acc, ref_acc, margin)


if __name__ == "__main__":
    key = jax.random.PRNGKey(0)
    k_small, k_tiled, k_pad = jax.random.split(key, 3)

    # Small single-tile case: n = 8 rows (4 samples x multiplier 2), D = 32.
    _check_case(k_small, n=8, d=32, d_clip=16)

    # Multi-tile case exercising the flash-style grid, gated diag mask and gated
    # positive-column extraction (4 x 4 tiles of 16).
    _check_case(k_tiled, n=64, d=32, d_clip=16, block_q=16, block_k=16)

    # Awkward batch size exercising the pad-and-mask path (n = 20 -> padded to 24).
    _check_case(k_pad, n=20, d=32, d_clip=16)

    print("KERNEL_OK")
</pallas_src>

<mosaic_0001>
module attributes {stable_mosaic.version = 11 : i64} {
  func.func @_ntxent_tiled_kernel(%arg0: i32, %arg1: i32, %arg2: memref<8x32xbf16, #tpu.memory_space<vmem>>, %arg3: memref<8x32xbf16, #tpu.memory_space<vmem>>, %arg4: memref<8x1xf32, #tpu.memory_space<vmem>>, %arg5: memref<8x1xf32, #tpu.memory_space<vmem>>, %arg6: memref<8x1xf32, #tpu.memory_space<vmem>>, %arg7: memref<8x1xf32, #tpu.memory_space<vmem>>, %arg8: memref<8x1xf32, #tpu.memory_space<vmem>>) attributes {dimension_semantics = [#tpu.dimension_semantics<parallel>, #tpu.dimension_semantics<arbitrary>], iteration_bounds = array<i64: 1, 1>, scalar_prefetch = 0 : i64, scratch_operands = 3 : i64, tpu.core_type = #tpu.core_type<tc>, window_params = [{transform_indices = @transform_0, window_bounds = array<i64: 8, 32>}, {transform_indices = @transform_1, window_bounds = array<i64: 8, 32>}, {transform_indices = @transform_2, window_bounds = array<i64: 8, 1>}, {transform_indices = @transform_3, window_bounds = array<i64: 8, 1>}]} {
    %c0_i32 = arith.constant 0 : i32
    %0 = arith.cmpi eq, %arg1, %c0_i32 : i32
    %1 = arith.extui %0 : i1 to i32
    %c0_i32_0 = arith.constant 0 : i32
    %2 = arith.cmpi ne, %1, %c0_i32_0 : i32
    scf.if %2 {
      %cst_18 = arith.constant 0xFF800000 : f32
      %36 = vector.broadcast %cst_18 : f32 to vector<8x1xf32>
      %c0_19 = arith.constant 0 : index
      %c0_20 = arith.constant 0 : index
      %37 = vector.load %arg6[%c0_19, %c0_20] : memref<8x1xf32, #tpu.memory_space<vmem>>, vector<8x1xf32>
      tpu.vector_store %arg6[%c0_19, %c0_20], %36 {strides = array<i32>} : memref<8x1xf32, #tpu.memory_space<vmem>>, vector<8x1xf32>,
      %cst_21 = arith.constant 0.000000e+00 : f32
      %38 = vector.broadcast %cst_21 : f32 to vector<8x1xf32>
      %c0_22 = arith.constant 0 : index
      %c0_23 = arith.constant 0 : index
      %39 = vector.load %arg7[%c0_22, %c0_23] : memref<8x1xf32, #tpu.memory_space<vmem>>, vector<8x1xf32>
      tpu.vector_store %arg7[%c0_22, %c0_23], %38 {strides = array<i32>} : memref<8x1xf32, #tpu.memory_space<vmem>>, vector<8x1xf32>,
      %cst_24 = arith.constant 0.000000e+00 : f32
      %40 = vector.broadcast %cst_24 : f32 to vector<8x1xf32>
      %c0_25 = arith.constant 0 : index
      %c0_26 = arith.constant 0 : index
      %41 = vector.load %arg8[%c0_25, %c0_26] : memref<8x1xf32, #tpu.memory_space<vmem>>, vector<8x1xf32>
      tpu.vector_store %arg8[%c0_25, %c0_26], %40 {strides = array<i32>} : memref<8x1xf32, #tpu.memory_space<vmem>>, vector<8x1xf32>,
    } else {
    }
    %c8_i32 = arith.constant 8 : i32
    %3 = arith.muli %arg0, %c8_i32 : i32
    %c8_i32_1 = arith.constant 8 : i32
    %4 = arith.muli %arg1, %c8_i32_1 : i32
    %c0 = arith.constant 0 : index
    %c0_2 = arith.constant 0 : index
    %5 = vector.load %arg2[%c0, %c0_2] : memref<8x32xbf16, #tpu.memory_space<vmem>>, vector<8x32xbf16>
    %c0_3 = arith.constant 0 : index
    %c0_4 = arith.constant 0 : index
    %6 = vector.load %arg3[%c0_3, %c0_4] : memref<8x32xbf16, #tpu.memory_space<vmem>>, vector<8x32xbf16>
    %cst = arith.constant dense<0.000000e+00> : vector<8x8xf32>
    %7 = tpu.matmul %5, %6, %cst {dimension_numbers = #tpu.dot_dimension_numbers<[1], [1], [0], [0], [0, 0, 1, 0], [], []>} : vector<8x32xbf16>, vector<8x32xbf16>, vector<8x8xf32> -> vector<8x8xf32>
    %c4_i32 = arith.constant 4 : i32
    %8 = arith.addi %3, %c4_i32 : i32
    %c8_i32_5 = arith.constant 8 : i32
    %9 = arith.cmpi sge, %8, %c8_i32_5 : i32
    %c8_i32_6 = arith.constant 8 : i32
    %10 = arith.subi %8, %c8_i32_6 : i32
    %11 = arith.select %9, %10, %8 : i32
    %c8_i32_7 = arith.constant 8 : i32
    %12 = arith.addi %11, %c8_i32_7 : i32
    %c8_i32_8 = arith.constant 8 : i32
    %13 = arith.addi %4, %c8_i32_8 : i32
    %14 = arith.cmpi slt, %11, %13 : i32
    %c8_i32_9 = arith.constant 8 : i32
    %15 = arith.minsi %12, %c8_i32_9 : i32
    %16 = arith.cmpi slt, %4, %15 : i32
    %17 = arith.andi %14, %16 : i1
    %c8_i32_10 = arith.constant 8 : i32
    %18 = arith.subi %12, %c8_i32_10 : i32
    %19 = arith.cmpi slt, %4, %18 : i32
    %20 = arith.ori %17, %19 : i1
    %21 = arith.extui %20 : i1 to i32
    %c0_i32_11 = arith.constant 0 : i32
    %22 = arith.cmpi ne, %21, %c0_i32_11 : i32
    scf.if %22 {
      %36 = tpu.iota {dimensions = array<i32: 0>} : vector<8x8xi32>
      %37 = vector.broadcast %3 : i32 to vector<8x8xi32>
      %38 = arith.addi %37, %36 : vector<8x8xi32>
      %39 = tpu.iota {dimensions = array<i32: 1>} : vector<8x8xi32>
      %40 = vector.broadcast %4 : i32 to vector<8x8xi32>
      %41 = arith.addi %40, %39 : vector<8x8xi32>
      %c4_i32_18 = arith.constant 4 : i32
      %42 = vector.broadcast %c4_i32_18 : i32 to vector<8x8xi32>
      %43 = arith.addi %38, %42 : vector<8x8xi32>
      %c8_i32_19 = arith.constant 8 : i32
      %44 = vector.broadcast %c8_i32_19 : i32 to vector<8x8xi32>
      %45 = arith.cmpi sge, %43, %44 : vector<8x8xi32>
      %c8_i32_20 = arith.constant 8 : i32
      %46 = vector.broadcast %c8_i32_20 : i32 to vector<8x8xi32>
      %47 = arith.subi %43, %46 : vector<8x8xi32>
      %48 = arith.select %45, %47, %43 : vector<8x8xi1>, vector<8x8xi32>
      %c0_21 = arith.constant 0 : index
      %c0_22 = arith.constant 0 : index
      %49 = vector.load %arg8[%c0_21, %c0_22] : memref<8x1xf32, #tpu.memory_space<vmem>>, vector<8x1xf32>
      %50 = arith.cmpi eq, %41, %48 : vector<8x8xi32>
      %cst_23 = arith.constant 0.000000e+00 : f32
      %51 = vector.broadcast %cst_23 : f32 to vector<8x8xf32>
      %52 = arith.select %50, %7, %51 : vector<8x8xi1>, vector<8x8xf32>
      %cst_24 = arith.constant dense<0.000000e+00> : vector<8xf32>
      %53 = vector.multi_reduction <add>, %52, %cst_24 [1] : vector<8x8xf32> to vector<8xf32>
      %54 = vector.shape_cast %53 : vector<8xf32> to vector<8x1xf32>
      %55 = arith.addf %49, %54 : vector<8x1xf32>
      %c0_25 = arith.constant 0 : index
      %c0_26 = arith.constant 0 : index
      %56 = vector.load %arg8[%c0_25, %c0_26] : memref<8x1xf32, #tpu.memory_space<vmem>>, vector<8x1xf32>
      tpu.vector_store %arg8[%c0_25, %c0_26], %55 {strides = array<i32>} : memref<8x1xf32, #tpu.memory_space<vmem>>, vector<8x1xf32>,
    } else {
    }
    %c8_i32_12 = arith.constant 8 : i32
    %23 = arith.addi %3, %c8_i32_12 : i32
    %24 = arith.cmpi slt, %4, %23 : i32
    %c8_i32_13 = arith.constant 8 : i32
    %25 = arith.addi %4, %c8_i32_13 : i32
    %26 = arith.cmpi slt, %3, %25 : i32
    %27 = arith.andi %24, %26 : i1
    %28 = arith.extui %27 : i1 to i32
    %c0_i32_14 = arith.constant 0 : i32
    %29 = arith.cmpi ne, %28, %c0_i32_14 : i32
    scf.if %29 {
      %36 = tpu.iota {dimensions = array<i32: 0>} : vector<8x8xi32>
      %37 = vector.broadcast %3 : i32 to vector<8x8xi32>
      %38 = arith.addi %37, %36 : vector<8x8xi32>
      %39 = tpu.iota {dimensions = array<i32: 1>} : vector<8x8xi32>
      %40 = vector.broadcast %4 : i32 to vector<8x8xi32>
      %41 = arith.addi %40, %39 : vector<8x8xi32>
      %42 = arith.cmpi eq, %41, %38 : vector<8x8xi32>
      %cst_18 = arith.constant -1.000000e+09 : f32
      %43 = vector.broadcast %cst_18 : f32 to vector<8x8xf32>
      %44 = arith.select %42, %43, %7 : vector<8x8xi1>, vector<8x8xf32>
      %cst_19 = arith.constant dense<0xFF800000> : vector<8xf32>
      %45 = vector.multi_reduction <maximumf>, %44, %cst_19 [1] : vector<8x8xf32> to vector<8xf32>
      %46 = vector.shape_cast %45 : vector<8xf32> to vector<8x1xf32>
      %c0_20 = arith.constant 0 : index
      %c0_21 = arith.constant 0 : index
      %47 = vector.load %arg6[%c0_20, %c0_21] : memref<8x1xf32, #tpu.memory_space<vmem>>, vector<8x1xf32>
      %48 = arith.maximumf %47, %46 : vector<8x1xf32>
      %c0_22 = arith.constant 0 : index
      %c0_23 = arith.constant 0 : index
      %49 = vector.load %arg6[%c0_22, %c0_23] : memref<8x1xf32, #tpu.memory_space<vmem>>, vector<8x1xf32>
      %50 = arith.subf %49, %48 : vector<8x1xf32>
      %51 = math.exp %50 : vector<8x1xf32>
      %c0_24 = arith.constant 0 : index
      %c0_25 = arith.constant 0 : index
      %52 = vector.load %arg7[%c0_24, %c0_25] : memref<8x1xf32, #tpu.memory_space<vmem>>, vector<8x1xf32>
      %53 = arith.mulf %51, %52 : vector<8x1xf32>
      %54 = vector.broadcast %48 : vector<8x1xf32> to vector<8x8xf32>
      %55 = arith.subf %44, %54 : vector<8x8xf32>
      %56 = math.exp %55 : vector<8x8xf32>
      %cst_26 = arith.constant dense<0.000000e+00> : vector<8xf32>
      %57 = vector.multi_reduction <add>, %56, %cst_26 [1] : vector<8x8xf32> to vector<8xf32>
      %58 = vector.shape_cast %57 : vector<8xf32> to vector<8x1xf32>
      %59 = arith.addf %53, %58 : vector<8x1xf32>
      %c0_27 = arith.constant 0 : index
      %c0_28 = arith.constant 0 : index
      %60 = vector.load %arg7[%c0_27, %c0_28] : memref<8x1xf32, #tpu.memory_space<vmem>>, vector<8x1xf32>
      tpu.vector_store %arg7[%c0_27, %c0_28], %59 {strides = array<i32>} : memref<8x1xf32, #tpu.memory_space<vmem>>, vector<8x1xf32>,
      %c0_29 = arith.constant 0 : index
      %c0_30 = arith.constant 0 : index
      %61 = vector.load %arg6[%c0_29, %c0_30] : memref<8x1xf32, #tpu.memory_space<vmem>>, vector<8x1xf32>
      tpu.vector_store %arg6[%c0_29, %c0_30], %48 {strides = array<i32>} : memref<8x1xf32, #tpu.memory_space<vmem>>, vector<8x1xf32>,
    } else {
    }
    %true = arith.constant true
    %30 = arith.xori %27, %true : i1
    %31 = arith.extui %30 : i1 to i32
    %c0_i32_15 = arith.constant 0 : i32
    %32 = arith.cmpi ne, %31, %c0_i32_15 : i32
    scf.if %32 {
      %cst_18 = arith.constant dense<0xFF800000> : vector<8xf32>
      %36 = vector.multi_reduction <maximumf>, %7, %cst_18 [1] : vector<8x8xf32> to vector<8xf32>
      %37 = vector.shape_cast %36 : vector<8xf32> to vector<8x1xf32>
      %c0_19 = arith.constant 0 : index
      %c0_20 = arith.constant 0 : index
      %38 = vector.load %arg6[%c0_19, %c0_20] : memref<8x1xf32, #tpu.memory_space<vmem>>, vector<8x1xf32>
      %39 = arith.maximumf %38, %37 : vector<8x1xf32>
      %c0_21 = arith.constant 0 : index
      %c0_22 = arith.constant 0 : index
      %40 = vector.load %arg6[%c0_21, %c0_22] : memref<8x1xf32, #tpu.memory_space<vmem>>, vector<8x1xf32>
      %41 = arith.subf %40, %39 : vector<8x1xf32>
      %42 = math.exp %41 : vector<8x1xf32>
      %c0_23 = arith.constant 0 : index
      %c0_24 = arith.constant 0 : index
      %43 = vector.load %arg7[%c0_23, %c0_24] : memref<8x1xf32, #tpu.memory_space<vmem>>, vector<8x1xf32>
      %44 = arith.mulf %42, %43 : vector<8x1xf32>
      %45 = vector.broadcast %39 : vector<8x1xf32> to vector<8x8xf32>
      %46 = arith.subf %7, %45 : vector<8x8xf32>
      %47 = math.exp %46 : vector<8x8xf32>
      %cst_25 = arith.constant dense<0.000000e+00> : vector<8xf32>
      %48 = vector.multi_reduction <add>, %47, %cst_25 [1] : vector<8x8xf32> to vector<8xf32>
      %49 = vector.shape_cast %48 : vector<8xf32> to vector<8x1xf32>
      %50 = arith.addf %44, %49 : vector<8x1xf32>
      %c0_26 = arith.constant 0 : index
      %c0_27 = arith.constant 0 : index
      %51 = vector.load %arg7[%c0_26, %c0_27] : memref<8x1xf32, #tpu.memory_space<vmem>>, vector<8x1xf32>
      tpu.vector_store %arg7[%c0_26, %c0_27], %50 {strides = array<i32>} : memref<8x1xf32, #tpu.memory_space<vmem>>, vector<8x1xf32>,
      %c0_28 = arith.constant 0 : index
      %c0_29 = arith.constant 0 : index
      %52 = vector.load %arg6[%c0_28, %c0_29] : memref<8x1xf32, #tpu.memory_space<vmem>>, vector<8x1xf32>
      tpu.vector_store %arg6[%c0_28, %c0_29], %39 {strides = array<i32>} : memref<8x1xf32, #tpu.memory_space<vmem>>, vector<8x1xf32>,
    } else {
    }
    %c0_i32_16 = arith.constant 0 : i32
    %33 = arith.cmpi eq, %arg1, %c0_i32_16 : i32
    %34 = arith.extui %33 : i1 to i32
    %c0_i32_17 = arith.constant 0 : i32
    %35 = arith.cmpi ne, %34, %c0_i32_17 : i32
    scf.if %35 {
      %c0_18 = arith.constant 0 : index
      %c0_19 = arith.constant 0 : index
      %36 = vector.load %arg6[%c0_18, %c0_19] : memref<8x1xf32, #tpu.memory_space<vmem>>, vector<8x1xf32>
      %c0_20 = arith.constant 0 : index
      %c0_21 = arith.constant 0 : index
      %37 = vector.load %arg7[%c0_20, %c0_21] : memref<8x1xf32, #tpu.memory_space<vmem>>, vector<8x1xf32>
      %38 = math.log %37 : vector<8x1xf32>
      %39 = arith.addf %36, %38 : vector<8x1xf32>
      %c0_22 = arith.constant 0 : index
      %c0_23 = arith.constant 0 : index
      %40 = vector.load %arg8[%c0_22, %c0_23] : memref<8x1xf32, #tpu.memory_space<vmem>>, vector<8x1xf32>
      %41 = arith.subf %39, %40 : vector<8x1xf32>
      %c0_24 = arith.constant 0 : index
      %c0_25 = arith.constant 0 : index
      %42 = vector.load %arg4[%c0_24, %c0_25] : memref<8x1xf32, #tpu.memory_space<vmem>>, vector<8x1xf32>
      tpu.vector_store %arg4[%c0_24, %c0_25], %41 {strides = array<i32>} : memref<8x1xf32, #tpu.memory_space<vmem>>, vector<8x1xf32>,
      %c0_26 = arith.constant 0 : index
      %c0_27 = arith.constant 0 : index
      %43 = vector.load %arg8[%c0_26, %c0_27] : memref<8x1xf32, #tpu.memory_space<vmem>>, vector<8x1xf32>
      %c0_28 = arith.constant 0 : index
      %c0_29 = arith.constant 0 : index
      %44 = vector.load %arg6[%c0_28, %c0_29] : memref<8x1xf32, #tpu.memory_space<vmem>>, vector<8x1xf32>
      %45 = arith.cmpf oge, %43, %44 : vector<8x1xf32>
      %46 = arith.extui %45 : vector<8x1xi1> to vector<8x1xi32>
      %47 = arith.sitofp %46 : vector<8x1xi32> to vector<8x1xf32>
      %c0_30 = arith.constant 0 : index
      %c0_31 = arith.constant 0 : index
      %48 = vector.load %arg5[%c0_30, %c0_31] : memref<8x1xf32, #tpu.memory_space<vmem>>, vector<8x1xf32>
      tpu.vector_store %arg5[%c0_30, %c0_31], %47 {strides = array<i32>} : memref<8x1xf32, #tpu.memory_space<vmem>>, vector<8x1xf32>,
    } else {
    }
    return
  }
  func.func @transform_0(%arg0: i32, %arg1: i32) -> (i32, i32) {
    %c0_i32 = arith.constant 0 : i32
    %c0_i32_0 = arith.constant 0 : i32
    return %arg0, %c0_i32 : i32, i32
  }
  func.func @transform_1(%arg0: i32, %arg1: i32) -> (i32, i32) {
    %c0_i32 = arith.constant 0 : i32
    %c0_i32_0 = arith.constant 0 : i32
    return %arg1, %c0_i32 : i32, i32
  }
  func.func @transform_2(%arg0: i32, %arg1: i32) -> (i32, i32) {
    %c0_i32 = arith.constant 0 : i32
    %c0_i32_0 = arith.constant 0 : i32
    return %arg0, %c0_i32 : i32, i32
  }
  func.func @transform_3(%arg0: i32, %arg1: i32) -> (i32, i32) {
    %c0_i32 = arith.constant 0 : i32
    %c0_i32_0 = arith.constant 0 : i32
    return %arg0, %c0_i32 : i32, i32
  }
}

</mosaic_0001>

<llo_original>
// kernel: tpu_custom_call.1
$region0: #{tpu_custom_call.1}
  #allocation0 [shape = 'u32[]', space=smem, size = 0x4, offset = 0x4, fixed_abs, tag = 'smem constant byte address 0x4 - core index']
  #allocation1 [shape = 'u32[144,128]{1,0:T(1,128)}', space=vmem, size = 0x12000, scoped, tag = 'internal scratch']
  #allocation2 [shape = 'f32[8,1]{1,0:T(8,128)}', space=vmem, size = 0x1000, scoped, tag = 'scratch operand']
  #allocation3 [shape = 'f32[8,1]{1,0:T(8,128)}', space=vmem, size = 0x1000, scoped, tag = 'scratch operand']
  #allocation4 [shape = 'f32[8,1]{1,0:T(8,128)}', space=vmem, size = 0x1000, scoped, tag = 'scratch operand']
  %s0 = inlined_call_operand.hbm [shape: bf16[8,32], index: 0, kind: input, shape index: {}]
  %s1 = inlined_call_operand.hbm [shape: bf16[8,32], index: 1, kind: input, shape index: {}]
  %s2 = inlined_call_operand.vmem [shape: f32[8,1], index: 2, kind: output, shape index: {0}]
  %s3 = inlined_call_operand.vmem [shape: f32[8,1], index: 3, kind: output, shape index: {1}]
  %4 = xla_tuple %s2, %s3
  %s5 = sld [smem:[#allocation0]]
  $region54: #{tpu_custom_call.1} parent=0
    _
  %s7 = ssub.s32 1, %s5
  %s8 = scalar_select 0, %s7, %s5
  $region1: #{tpu_custom_call.1} parent=0
    #allocation5 [shape = 'u8[2048]{0}', space=vmem, size = 0x800, scoped, tag = 'input window, operand 0, single buffered']
    #allocation6 [shape = 's32[1]{0}', space=sflag, size = 0x4, scoped, tag = 'scoped memory for tpu_custom_call.1']
    #allocation7 [shape = 'u8[2048]{0}', space=vmem, size = 0x800, scoped, tag = 'input window, operand 1, single buffered']
    #allocation8 [shape = 's32[1]{0}', space=sflag, size = 0x4, scoped, tag = 'scoped memory for tpu_custom_call.1']
    %9 = vsyncpa [#allocation6], 0
    %10 = vsyncpa [#allocation8], 0
    // Predicated region
    $region2: #{tpu_custom_call.1} parent=1 // pred_check
      _
    $region3: #{tpu_custom_call.1} parent=1 // pred_check_branch
      %12 = sbr.rel (0) target = $region5
    $region4: #{tpu_custom_call.1} parent=1 // pred_region
      %s14 = ssub.s32 64, 64
      %15 = vsyncadd [#allocation6], %s14
      %s17 = sshll.u32 [#allocation5], 4
      %s18 = int_to_ptr.vmem [resolvable:$true] %s17
      %20 = dma.hbm_to_vmem [thread:$0]  %s0, 64, %s18, [#allocation6]
    $region5: #{tpu_custom_call.1} parent=1 // pred_fallthru
      _
    // Predicated region
    $region6: #{tpu_custom_call.1} parent=1 // pred_check
      _
    $region7: #{tpu_custom_call.1} parent=1 // pred_check_branch
      %22 = sbr.rel (0) target = $region9
    $region8: #{tpu_custom_call.1} parent=1 // pred_region
      %s24 = ssub.s32 64, 64
      %25 = vsyncadd [#allocation8], %s24
      %s27 = sshll.u32 [#allocation7], 4
      %s28 = int_to_ptr.vmem [resolvable:$true] %s27
      %30 = dma.hbm_to_vmem [thread:$0]  %s1, 64, %s28, [#allocation8]
    $region9: #{tpu_custom_call.1} parent=1 // pred_fallthru
      _
    // Predicated region
    $region10: #{tpu_custom_call.1} parent=1 // pred_check
      _
    $region11: #{tpu_custom_call.1} parent=1 // pred_check_branch
      %32 = sbr.rel (0) target = $region13
    $region12: #{tpu_custom_call.1} parent=1 // pred_region
      %33 = dma.done [#allocation6], 64
    $region13: #{tpu_custom_call.1} parent=1 // pred_fallthru
      _
    // Predicated region
    $region14: #{tpu_custom_call.1} parent=1 // pred_check
      _
    $region15: #{tpu_custom_call.1} parent=1 // pred_check_branch
      %35 = sbr.rel (0) target = $region17
    $region16: #{tpu_custom_call.1} parent=1 // pred_region
      %36 = dma.done [#allocation8], 64
    $region17: #{tpu_custom_call.1} parent=1 // pred_fallthru
      _
    %p38 = scmp.eq.s32.totalorder 0, 0
    // Predicated region
    $region18: #{tpu_custom_call.1} parent=1 // pred_check
      %p39 = pneg %p38
    $region19: #{tpu_custom_call.1} parent=1 // pred_check_branch
      %41 = sbr.rel (%p39) target = $region21
    $region20: #{tpu_custom_call.1} parent=1 // pred_region
      %vm42 = vcmask 7168
      %43 = vst.msk [vmem:[#allocation2] sm:$0xff] %vm42, -inf
      %44 = vst.msk [vmem:[#allocation3] sm:$0xff] %vm42, 0.0
      %45 = vst.msk [vmem:[#allocation4] sm:$0xff] %vm42, 0.0
    $region21: #{tpu_custom_call.1} parent=1 // pred_fallthru
      _
    %s46 = smul.u32 0, 8
    %s47 = smul.u32 0, 8
    %v48 = vld [vmem:[#allocation5] sm:$0xf]
    %v49 = vld [vmem:[#allocation7] sm:$0xf]
    %vm50 = vcmask 261120
    %v52 = vsel %vm50, %v48, 0
    %v55 = vsel %vm50, %v49, 0
    %57 = vmatprep.subr.bf16.mxu0 0
    %58 = vmatpush1.bf16.xpose.msra.mxu0 0
    %59 = vmatprep.subr.bf16.mxu0 0
    %60 = vmatpush1.bf16.xpose.msra.mxu0 0
    %61 = vmatprep.subr.bf16.mxu0 0
    %62 = vmatpush1.bf16.xpose.msra.mxu0 0
    %63 = vmatprep.subr.bf16.mxu0 0
    %64 = vmatpush1.bf16.xpose.msra.mxu0 0
    %65 = vmatprep.subr.bf16.mxu0 0
    %66 = vmatpush1.bf16.xpose.msra.mxu0 0
    %67 = vmatprep.subr.bf16.mxu0 0
    %68 = vmatpush1.bf16.xpose.msra.mxu0 0
    %69 = vmatprep.subr.bf16.mxu0 0
    %70 = vmatpush1.bf16.xpose.msra.mxu0 0
    %71 = vmatprep.subr.bf16.mxu0 0
    %72 = vmatpush1.bf16.xpose.msra.mxu0 %v55
    %73 = vmatprep.subr.bf16.mxu0 0
    %74 = vmatpush2.bf16.xpose.msra.mxu0 0
    %75 = vmatprep.subr.bf16.mxu0 0
    %76 = vmatpush2.bf16.xpose.msra.mxu0 0
    %77 = vmatprep.subr.bf16.mxu0 0
    %78 = vmatpush2.bf16.xpose.msra.mxu0 0
    %79 = vmatprep.subr.bf16.mxu0 0
    %80 = vmatpush2.bf16.xpose.msra.mxu0 0
    %81 = vmatprep.subr.bf16.mxu0 0
    %82 = vmatpush2.bf16.xpose.msra.mxu0 0
    %83 = vmatprep.subr.bf16.mxu0 0
    %84 = vmatpush2.bf16.xpose.msra.mxu0 0
    %85 = vmatprep.subr.bf16.mxu0 0
    %86 = vmatpush2.bf16.xpose.msra.mxu0 0
    %87 = vmatprep.subr.bf16.mxu0 0
    %88 = vmatpush2.bf16.xpose.msra.mxu0 0
    %89 = vmatprep.mubr.bf16.mxu0 0
    %90 = vmatmul.mubr.bf16.gmra.mxu0 %v52
    %v91 = vpop.f32.mrf.mxu0
    %v92 = vadd.f32 0.0, %v91
    %v93 = vpop.f32.mrf.mxu0
    %v94 = vpop.f32.mrf.mxu0
    %v95 = vpop.f32.mrf.mxu0
    %96 = vdwg.mxu0
    %s97 = sadd.s32 %s46, 4
    %p98 = scmp.ge.s32.totalorder %s97, 8
    %s99 = sadd.s32 %s46, 4294967292
    %s100 = scalar_select %p98, %s99, %s97
    %s101 = sadd.s32 %s100, 8
    %s102 = sadd.s32 %s47, 8
    %p103 = scmp.lt.s32.totalorder %s100, %s102
    %p104 = scmp.lt.s32.totalorder %s101, 8
    %s105 = scalar_select %p104, %s101, 8
    %p106 = scmp.lt.s32.totalorder %s47, %s105
    %p107 = pnand %p103, %p106
    %p108 = pneg %p107
    %p109 = scmp.lt.s32.totalorder %s47, %s100
    %p110 = por %p108, %p109
    // Predicated region
    $region22: #{tpu_custom_call.1} parent=1 // pred_check
      %p111 = pneg %p110
    $region23: #{tpu_custom_call.1} parent=1 // pred_check_branch
      %113 = sbr.rel (%p111) target = $region25
    $region24: #{tpu_custom_call.1} parent=1 // pred_region
      %v114 = vlaneseq
      %v115 = vshrl.u32 %v114, 7
      %v116 = vstv %s46
      %v117 = vadd.s32 %v116, %v115
      %v118 = vlaneseq
      %v119 = vand.u32 %v118, 127
      %v120 = vstv %s47
      %v121 = vadd.s32 %v120, %v119
      %v122 = vadd.s32 %v117, 4
      %vm123 = vcmp.ge.s32.totalorder %v122, 8
      %v124 = vsub.s32 %v122, 8
      %v125 = vsel %vm123, %v124, %v122
      %v126 = vld [vmem:[#allocation4] sm:$0xff]
      %vm127 = vcmp.eq.s32.totalorder %v121, %v125
      %v128 = vsel %vm127, %v92, 0.0
      %vm129 = vcmask 64512
      %v130 = vsel %vm129, %v128, 0.0
      %131 = vadd.xlane.f32.xlu0 %v130
      %v132 = vpop.xlane.xlu0 %131
      %v133 = vadd.f32 %v126, %v132
      %vm134 = vcmask 7168
      %135 = vst.msk [vmem:[#allocation4] sm:$0xff] %vm134, %v133
    $region25: #{tpu_custom_call.1} parent=1 // pred_fallthru
      _
    %s136 = sadd.s32 %s46, 8
    %p137 = scmp.lt.s32.totalorder %s47, %s136
    %p138 = scmp.lt.s32.totalorder %s46, %s102
    %p139 = pnand %p137, %p138
    %p140 = pneg %p139
    // Predicated region
    $region26: #{tpu_custom_call.1} parent=1 // pred_check
      _
    $region27: #{tpu_custom_call.1} parent=1 // pred_check_branch
      %142 = sbr.rel (%p139) target = $region29
    $region28: #{tpu_custom_call.1} parent=1 // pred_region
      %v143 = vlaneseq
      %v144 = vshrl.u32 %v143, 7
      %v145 = vstv %s46
      %v146 = vadd.s32 %v145, %v144
      %v147 = vlaneseq
      %v148 = vand.u32 %v147, 127
      %v149 = vstv %s47
      %v150 = vadd.s32 %v149, %v148
      %vm151 = vcmp.eq.s32.totalorder %v150, %v146
      %v152 = vsel %vm151, -1e+09, %v92
      %vm153 = vcmask 64512
      %v154 = vsel %vm153, %v152, -inf
      %155 = vmax.xlane.f32.xlu0 %v154
      %v156 = vpop.xlane.xlu0 %155
      %v157 = vld [vmem:[#allocation2] sm:$0xff]
      %v158 = vmax.f32 %v157, %v156
      %v159 = vsub.f32 %v157, %v158
      %v160 = vmul.f32 %v159, 1.442695
      %v161 = vpow.pop %v160
      %v162 = vld [vmem:[#allocation3] sm:$0xff]
      %v163 = vmul.f32 %v161, %v162
      %165 = vset.pattern.permute.xlu0 0
      %166 = vperm.xlu0 %165, %v158
      %v167 = vpop.permute.xlu0 %166
      %v169 = vsub.f32 %v152, %v167
      %v170 = vmul.f32 %v169, 1.442695
      %v171 = vpow.pop %v170
      %v172 = vsel %vm153, %v171, 0.0
      %173 = vadd.xlane.f32.xlu0 %v172
      %v174 = vpop.xlane.xlu0 %173
      %v175 = vadd.f32 %v163, %v174
      %vm176 = vcmask 7168
      %177 = vst.msk [vmem:[#allocation3] sm:$0xff] %vm176, %v175
      %178 = vst.msk [vmem:[#allocation2] sm:$0xff] %vm176, %v158
    $region29: #{tpu_custom_call.1} parent=1 // pred_fallthru
      _
    %p179 = pneg %p140
    // Predicated region
    $region30: #{tpu_custom_call.1} parent=1 // pred_check
      _
    $region31: #{tpu_custom_call.1} parent=1 // pred_check_branch
      %181 = sbr.rel (%p140) target = $region33
    $region32: #{tpu_custom_call.1} parent=1 // pred_region
      %vm182 = vcmask 64512
      %v183 = vsel %vm182, %v92, -inf
      %184 = vmax.xlane.f32.xlu0 %v183
      %v185 = vpop.xlane.xlu0 %184
      %v186 = vld [vmem:[#allocation2] sm:$0xff]
      %v187 = vmax.f32 %v186, %v185
      %v188 = vsub.f32 %v186, %v187
      %v189 = vmul.f32 %v188, 1.442695
      %v190 = vpow.pop %v189
      %v191 = vld [vmem:[#allocation3] sm:$0xff]
      %v192 = vmul.f32 %v190, %v191
      %194 = vset.pattern.permute.xlu0 0
      %195 = vperm.xlu0 %194, %v187
      %v196 = vpop.permute.xlu0 %195
      %v198 = vsub.f32 %v92, %v196
      %v199 = vmul.f32 %v198, 1.442695
      %v200 = vpow.pop %v199
      %v201 = vsel %vm182, %v200, 0.0
      %202 = vadd.xlane.f32.xlu0 %v201
      %v203 = vpop.xlane.xlu0 %202
      %v204 = vadd.f32 %v192, %v203
      %vm205 = vcmask 7168
      %206 = vst.msk [vmem:[#allocation3] sm:$0xff] %vm205, %v204
      %207 = vst.msk [vmem:[#allocation2] sm:$0xff] %vm205, %v187
    $region33: #{tpu_custom_call.1} parent=1 // pred_fallthru
      _
    // Predicated region
    $region34: #{tpu_custom_call.1} parent=1 // pred_check
      %p208 = pneg %p38
    $region35: #{tpu_custom_call.1} parent=1 // pred_check_branch
      %210 = sbr.rel (%p208) target = $region37
    $region36: #{tpu_custom_call.1} parent=1 // pred_region
      %v211 = vld [vmem:[#allocation2] sm:$0xff]
      %v212 = vld [vmem:[#allocation3] sm:$0xff]
      %v213 = vlog2.pop %v212
      %v214 = vmul.f32 %v213, 0.6931472
      %v215 = vadd.f32 %v211, %v214
      %v216 = vld [vmem:[#allocation4] sm:$0xff]
      %v217 = vsub.f32 %v215, %v216
      %vm218 = vcmask 7168
      %219 = vst.msk [vmem:[%s2] sm:$0xff] %vm218, %v217
      %v220 = vld [vmem:[#allocation4] sm:$0xff]
      %v221 = vld [vmem:[#allocation2] sm:$0xff]
      %vm222 = vcmp.ge.f32.partialorder %v220, %v221
      %v223 = vsel %vm222, 1, 0
      %v224 = vcvt.s32.f32 %v223
      %225 = vst.msk [vmem:[%s3] sm:$0xff] %vm218, %v224
    $region37: #{tpu_custom_call.1} parent=1 // pred_fallthru
      _
    // Predicated region
    $region38: #{tpu_custom_call.1} parent=1 // pred_check
      _
    $region39: #{tpu_custom_call.1} parent=1 // pred_check_branch
      %227 = sbr.rel (0) target = $region41
    $region40: #{tpu_custom_call.1} parent=1 // pred_region
      _
    $region41: #{tpu_custom_call.1} parent=1 // pred_fallthru
      _
    // Predicated region
    $region42: #{tpu_custom_call.1} parent=1 // pred_check
      _
    $region43: #{tpu_custom_call.1} parent=1 // pred_check_branch
      %229 = sbr.rel (0) target = $region45
    $region44: #{tpu_custom_call.1} parent=1 // pred_region
      _
    $region45: #{tpu_custom_call.1} parent=1 // pred_fallthru
      _
    // Predicated region
    $region46: #{tpu_custom_call.1} parent=1 // pred_check
      _
    $region47: #{tpu_custom_call.1} parent=1 // pred_check_branch
      %231 = sbr.rel (0) target = $region49
    $region48: #{tpu_custom_call.1} parent=1 // pred_region
      _
    $region49: #{tpu_custom_call.1} parent=1 // pred_fallthru
      _
    // Predicated region
    $region50: #{tpu_custom_call.1} parent=1 // pred_check
      _
    $region51: #{tpu_custom_call.1} parent=1 // pred_check_branch
      %233 = sbr.rel (0) target = $region53
    $region52: #{tpu_custom_call.1} parent=1 // pred_region
      _
    $region53: #{tpu_custom_call.1} parent=1 // pred_fallthru
      _
    %234 = vsyncpa [#allocation6], 1
    %235 = vsyncpa [#allocation8], 1

</llo_original>
